<compile_context>
chip_gen: v7x
topology: tpu7x:2x2x1
jax: 0.10.0
libtpu: 0.0.40
codegen_flags: <defaults>
</compile_context>

<pallas_src>
import functools

import jax
import jax.numpy as jnp
from jax.experimental import pallas as pl
from jax.experimental.pallas import tpu as pltpu


def _reranker_kernel(uh_ref, uz_ref, it_ref,
                     w0i_ref,
                     w1_ref, b1_ref,
                     w2_ref, b2_ref,
                     w3_ref, wwi_ref,
                     o_ref):
    f32 = jnp.float32
    bf16 = jnp.bfloat16

    it = it_ref[0]            # (tc, D)  bf16 : this tile's candidate embeddings
    uh = uh_ref[0]            # (1, 2D)  f32  : user @ W0_user + b0
    uz = uz_ref[0]            # (1, 1)   f32  : user @ Wwide_user + bw + b3

    # deep layer 0:  x @ W0 + b0 == it @ W0_item + (user @ W0_user + b0)
    h = jnp.dot(it, w0i_ref[...], preferred_element_type=f32) + uh
    h = jnp.maximum(h, 0.0)

    # deep layers 1 / 2 (matmul in bf16, bias + ReLU in f32)
    h = jnp.dot(h.astype(bf16), w1_ref[...], preferred_element_type=f32) + b1_ref[...]
    h = jnp.maximum(h, 0.0)
    h = jnp.dot(h.astype(bf16), w2_ref[...], preferred_element_type=f32) + b2_ref[...]
    h = jnp.maximum(h, 0.0)

    # final deep column + wide layer (item half); user half + biases folded in uz
    z = jnp.dot(h.astype(bf16), w3_ref[...], preferred_element_type=f32)      # (tc, 1)
    z = z + jnp.dot(it, wwi_ref[...], preferred_element_type=f32)             # (tc, 1)
    z = z + uz

    # numerically stable sigmoid: exp on the EUP, one exact divide
    e = jnp.exp(-jnp.abs(z))
    num = jnp.where(z >= 0.0, 1.0, e)
    o_ref[0] = num / (1.0 + e)


def _round_up(x, m):
    return ((x + m - 1) // m) * m


def _full_spec(shape):
    n = len(shape)
    return pl.BlockSpec(shape, lambda b, c: (0,) * n)


def reranker_scores_pallas(user_emb, item_emb, params, *, tile_candidates=512):
    """user_emb: (B, D) f32, item_emb: (B, C, D) f32 -> (B, C) scores in (0, 1)."""
    B, C, D = item_emb.shape

    # Row tile over candidates: large by default, clamped to the padded candidate
    # count, multiple of 16 sublanes (bf16-friendly).
    tc = max(16, min(_round_up(tile_candidates, 16), _round_up(C, 16)))
    c_pad = _round_up(C, tc)
    grid = (B, c_pad // tc)

    # bf16 candidate embeddings, zero-padded along the candidate axis.
    it = item_emb
    if c_pad != C:
        it = jnp.pad(it, ((0, 0), (0, c_pad - C), (0, 0)))
    it = it.astype(jnp.bfloat16)

    w0, ww = params["w0"], params["ww"]
    w0_i = w0[D:].astype(jnp.bfloat16)            # item half of first deep layer
    ww_i = ww[D:].astype(jnp.bfloat16)            # item half of wide layer
    w1 = params["w1"].astype(jnp.bfloat16)
    w2 = params["w2"].astype(jnp.bfloat16)
    w3 = params["w3"].astype(jnp.bfloat16)
    b1 = params["b1"].astype(jnp.float32)
    b2 = params["b2"].astype(jnp.float32)

    # Per-user contributions (B rows, negligible cost) so the user half of x is
    # never replicated across candidates in HBM.
    u_h0 = (user_emb @ w0[:D] + params["b0"]).astype(jnp.float32)                  # (B, 2D)
    u_z = (user_emb @ ww[:D] + params["bw"] + params["b3"]).astype(jnp.float32)    # (B, 1)
    u_h0 = u_h0.reshape(B, 1, 2 * D)
    u_z = u_z.reshape(B, 1, 1)

    in_specs = [
        pl.BlockSpec((1, 1, 2 * D), lambda b, c: (b, 0, 0)),   # user deep-0 contribution
        pl.BlockSpec((1, 1, 1), lambda b, c: (b, 0, 0)),       # user wide + biases
        pl.BlockSpec((1, tc, D), lambda b, c: (b, c, 0)),      # candidate embeddings
        _full_spec(w0_i.shape),
        _full_spec(w1.shape), _full_spec(b1.shape),
        _full_spec(w2.shape), _full_spec(b2.shape),
        _full_spec(w3.shape), _full_spec(ww_i.shape),
    ]
    out_spec = pl.BlockSpec((1, tc, 1), lambda b, c: (b, c, 0))

    out = pl.pallas_call(
        _reranker_kernel,
        out_shape=jax.ShapeDtypeStruct((B, c_pad, 1), jnp.float32),
        grid_spec=pltpu.PrefetchScalarGridSpec(
            num_scalar_prefetch=0,
            grid=grid,
            in_specs=in_specs,
            out_specs=out_spec,
        ),
        compiler_params=pltpu.CompilerParams(
            dimension_semantics=("parallel", "parallel")),
    )(u_h0, u_z, it, w0_i, w1, b1, w2, b2, w3, ww_i)

    return out[:, :C, 0]


def init_params(key, n_users, n_items, embd_dim, hidden_mults=(2, 3, 4)):
    D = embd_dim
    hidden_dims = [2 * D] + [D * h for h in hidden_mults] + [1]
    keys = jax.random.split(key, 2 + (len(hidden_dims) - 1) + 1)
    ki = iter(keys)

    def lin(k, fan_in, fan_out):
        scale = 1.0 / jnp.sqrt(fan_in)
        kw, kb = jax.random.split(k)
        w = jax.random.uniform(kw, (fan_in, fan_out), jnp.float32, -scale, scale)
        b = jax.random.uniform(kb, (1, fan_out), jnp.float32, -scale, scale)
        return w, b

    params = {
        "user_embedding": jax.random.normal(next(ki), (n_users + 1, D), jnp.float32),
        "item_embedding": jax.random.normal(next(ki), (n_items + 1, D), jnp.float32),
    }
    names = ["w0", "w1", "w2", "w3"]
    for idx, (fi, fo) in enumerate(zip(hidden_dims[:-1], hidden_dims[1:])):
        w, b = lin(next(ki), fi, fo)
        params[names[idx]] = w
        params["b" + names[idx][1:]] = b
    ww, bw = lin(next(ki), 2 * D, 1)
    params["ww"], params["bw"] = ww, bw
    # NOTE: self.deep_layer of the PyTorch module is never used in forward(), so it is omitted.
    return params


@functools.partial(jax.jit, static_argnames=("tile_candidates",))
def reranker_forward(params, user_id, candidate_items, labels=None, *, tile_candidates=512):
    user_emb = params["user_embedding"][user_id]              # (B, D)
    item_emb = params["item_embedding"][candidate_items]      # (B, C, D)

    output = reranker_scores_pallas(user_emb, item_emb, params,
                                    tile_candidates=tile_candidates)   # (B, C) == .squeeze()

    loss = None
    if labels is not None:
        p = jnp.clip(output, 1e-7, 1.0 - 1e-7)
        loss = -jnp.mean(labels * jnp.log(p) + (1.0 - labels) * jnp.log(1.0 - p))
    return output, loss


if __name__ == "__main__":
    n_users, n_items, embd_dim = 10, 50, 32
    B, C = 4, 64                                  # 4 users, 64 candidates each

    key = jax.random.PRNGKey(0)
    kp, ku, kc, kl = jax.random.split(key, 4)

    params = init_params(kp, n_users, n_items, embd_dim)
    user_id = jax.random.randint(ku, (B,), 0, n_users + 1)
    candidate_items = jax.random.randint(kc, (B, C), 0, n_items + 1)
    labels = jax.random.bernoulli(kl, 0.5, (B, C)).astype(jnp.float32)

    output, loss = reranker_forward(params, user_id, candidate_items, labels)
    jax.block_until_ready((output, loss))

    assert output.shape == (B, C)
    assert bool(jnp.all((output > 0.0) & (output < 1.0)))
    assert bool(jnp.isfinite(loss))
    print("KERNEL_OK")
</pallas_src>

<mosaic_0001>
module attributes {stable_mosaic.version = 11 : i64} {
  func.func @_reranker_kernel(%arg0: i32, %arg1: i32, %arg2: memref<1x1x64xf32, #tpu.memory_space<vmem>>, %arg3: memref<1x1x1xf32, #tpu.memory_space<vmem>>, %arg4: memref<1x64x32xbf16, #tpu.memory_space<vmem>>, %arg5: memref<32x64xbf16, #tpu.memory_space<vmem>>, %arg6: memref<64x96xbf16, #tpu.memory_space<vmem>>, %arg7: memref<1x96xf32, #tpu.memory_space<vmem>>, %arg8: memref<96x128xbf16, #tpu.memory_space<vmem>>, %arg9: memref<1x128xf32, #tpu.memory_space<vmem>>, %arg10: memref<128x1xbf16, #tpu.memory_space<vmem>>, %arg11: memref<32x1xbf16, #tpu.memory_space<vmem>>, %arg12: memref<1x64x1xf32, #tpu.memory_space<vmem>>) attributes {dimension_semantics = [#tpu.dimension_semantics<parallel>, #tpu.dimension_semantics<parallel>], iteration_bounds = array<i64: 4, 1>, scalar_prefetch = 0 : i64, scratch_operands = 0 : i64, tpu.core_type = #tpu.core_type<tc>, window_params = [{transform_indices = @transform_0, window_bounds = array<i64: 1, 1, 64>}, {transform_indices = @transform_1, window_bounds = array<i64: 1, 1, 1>}, {transform_indices = @transform_2, window_bounds = array<i64: 1, 64, 32>}, {pipeline_mode = #tpu.pipeline_mode<synchronous>, transform_indices = @transform_3, window_bounds = array<i64: 32, 64>}, {pipeline_mode = #tpu.pipeline_mode<synchronous>, transform_indices = @transform_4, window_bounds = array<i64: 64, 96>}, {pipeline_mode = #tpu.pipeline_mode<synchronous>, transform_indices = @transform_5, window_bounds = array<i64: 1, 96>}, {pipeline_mode = #tpu.pipeline_mode<synchronous>, transform_indices = @transform_6, window_bounds = array<i64: 96, 128>}, {pipeline_mode = #tpu.pipeline_mode<synchronous>, transform_indices = @transform_7, window_bounds = array<i64: 1, 128>}, {pipeline_mode = #tpu.pipeline_mode<synchronous>, transform_indices = @transform_8, window_bounds = array<i64: 128, 1>}, {pipeline_mode = #tpu.pipeline_mode<synchronous>, transform_indices = @transform_9, window_bounds = array<i64: 32, 1>}, {transform_indices = @transform_10, window_bounds = array<i64: 1, 64, 1>}]} {
    %c0 = arith.constant 0 : index
    %c0_0 = arith.constant 0 : index
    %c0_1 = arith.constant 0 : index
    %0 = vector.load %arg4[%c0, %c0_0, %c0_1] : memref<1x64x32xbf16, #tpu.memory_space<vmem>>, vector<1x64x32xbf16>
    %1 = vector.shape_cast %0 : vector<1x64x32xbf16> to vector<64x32xbf16>
    %c0_2 = arith.constant 0 : index
    %c0_3 = arith.constant 0 : index
    %c0_4 = arith.constant 0 : index
    %2 = vector.load %arg2[%c0_2, %c0_3, %c0_4] : memref<1x1x64xf32, #tpu.memory_space<vmem>>, vector<1x1x64xf32>
    %3 = vector.shape_cast %2 : vector<1x1x64xf32> to vector<1x64xf32>
    %c0_5 = arith.constant 0 : index
    %c0_6 = arith.constant 0 : index
    %c0_7 = arith.constant 0 : index
    %4 = vector.load %arg3[%c0_5, %c0_6, %c0_7] : memref<1x1x1xf32, #tpu.memory_space<vmem>>, vector<1x1x1xf32>
    %5 = vector.shape_cast %4 : vector<1x1x1xf32> to vector<1x1xf32>
    %c0_8 = arith.constant 0 : index
    %c0_9 = arith.constant 0 : index
    %6 = vector.load %arg5[%c0_8, %c0_9] : memref<32x64xbf16, #tpu.memory_space<vmem>>, vector<32x64xbf16>
    %cst = arith.constant dense<0.000000e+00> : vector<64x64xf32>
    %7 = tpu.matmul %1, %6, %cst {dimension_numbers = #tpu.dot_dimension_numbers<[1], [0], [0], [1], [0, 0, 1, 1], [], []>} : vector<64x32xbf16>, vector<32x64xbf16>, vector<64x64xf32> -> vector<64x64xf32>
    %8 = vector.broadcast %3 : vector<1x64xf32> to vector<64x64xf32>
    %9 = arith.addf %7, %8 : vector<64x64xf32>
    %cst_10 = arith.constant 0.000000e+00 : f32
    %10 = vector.broadcast %cst_10 : f32 to vector<64x64xf32>
    %11 = arith.maximumf %9, %10 : vector<64x64xf32>
    %12 = arith.truncf %11 : vector<64x64xf32> to vector<64x64xbf16>
    %c0_11 = arith.constant 0 : index
    %c0_12 = arith.constant 0 : index
    %13 = vector.load %arg6[%c0_11, %c0_12] : memref<64x96xbf16, #tpu.memory_space<vmem>>, vector<64x96xbf16>
    %cst_13 = arith.constant dense<0.000000e+00> : vector<64x96xf32>
    %14 = tpu.matmul %12, %13, %cst_13 {dimension_numbers = #tpu.dot_dimension_numbers<[1], [0], [0], [1], [0, 0, 1, 1], [], []>} : vector<64x64xbf16>, vector<64x96xbf16>, vector<64x96xf32> -> vector<64x96xf32>
    %c0_14 = arith.constant 0 : index
    %c0_15 = arith.constant 0 : index
    %15 = vector.load %arg7[%c0_14, %c0_15] : memref<1x96xf32, #tpu.memory_space<vmem>>, vector<1x96xf32>
    %16 = vector.broadcast %15 : vector<1x96xf32> to vector<64x96xf32>
    %17 = arith.addf %14, %16 : vector<64x96xf32>
    %cst_16 = arith.constant 0.000000e+00 : f32
    %18 = vector.broadcast %cst_16 : f32 to vector<64x96xf32>
    %19 = arith.maximumf %17, %18 : vector<64x96xf32>
    %20 = arith.truncf %19 : vector<64x96xf32> to vector<64x96xbf16>
    %c0_17 = arith.constant 0 : index
    %c0_18 = arith.constant 0 : index
    %21 = vector.load %arg8[%c0_17, %c0_18] : memref<96x128xbf16, #tpu.memory_space<vmem>>, vector<96x128xbf16>
    %cst_19 = arith.constant dense<0.000000e+00> : vector<64x128xf32>
    %22 = tpu.matmul %20, %21, %cst_19 {dimension_numbers = #tpu.dot_dimension_numbers<[1], [0], [0], [1], [0, 0, 1, 1], [], []>} : vector<64x96xbf16>, vector<96x128xbf16>, vector<64x128xf32> -> vector<64x128xf32>
    %c0_20 = arith.constant 0 : index
    %c0_21 = arith.constant 0 : index
    %23 = vector.load %arg9[%c0_20, %c0_21] : memref<1x128xf32, #tpu.memory_space<vmem>>, vector<1x128xf32>
    %24 = vector.broadcast %23 : vector<1x128xf32> to vector<64x128xf32>
    %25 = arith.addf %22, %24 : vector<64x128xf32>
    %cst_22 = arith.constant 0.000000e+00 : f32
    %26 = vector.broadcast %cst_22 : f32 to vector<64x128xf32>
    %27 = arith.maximumf %25, %26 : vector<64x128xf32>
    %28 = arith.truncf %27 : vector<64x128xf32> to vector<64x128xbf16>
    %c0_23 = arith.constant 0 : index
    %c0_24 = arith.constant 0 : index
    %29 = vector.load %arg10[%c0_23, %c0_24] : memref<128x1xbf16, #tpu.memory_space<vmem>>, vector<128x1xbf16>
    %cst_25 = arith.constant dense<0.000000e+00> : vector<64x1xf32>
    %30 = tpu.matmul %28, %29, %cst_25 {dimension_numbers = #tpu.dot_dimension_numbers<[1], [0], [0], [1], [0, 0, 1, 1], [], []>} : vector<64x128xbf16>, vector<128x1xbf16>, vector<64x1xf32> -> vector<64x1xf32>
    %c0_26 = arith.constant 0 : index
    %c0_27 = arith.constant 0 : index
    %31 = vector.load %arg11[%c0_26, %c0_27] : memref<32x1xbf16, #tpu.memory_space<vmem>>, vector<32x1xbf16>
    %cst_28 = arith.constant dense<0.000000e+00> : vector<64x1xf32>
    %32 = tpu.matmul %1, %31, %cst_28 {dimension_numbers = #tpu.dot_dimension_numbers<[1], [0], [0], [1], [0, 0, 1, 1], [], []>} : vector<64x32xbf16>, vector<32x1xbf16>, vector<64x1xf32> -> vector<64x1xf32>
    %33 = arith.addf %30, %32 : vector<64x1xf32>
    %34 = vector.broadcast %5 : vector<1x1xf32> to vector<64x1xf32>
    %35 = arith.addf %33, %34 : vector<64x1xf32>
    %36 = math.absf %35 : vector<64x1xf32>
    %cst_29 = arith.constant 0.000000e+00 : f32
    %37 = vector.broadcast %cst_29 : f32 to vector<64x1xf32>
    %38 = arith.subf %37, %36 : vector<64x1xf32>
    %39 = math.exp %38 : vector<64x1xf32>
    %cst_30 = arith.constant 0.000000e+00 : f32
    %40 = vector.broadcast %cst_30 : f32 to vector<64x1xf32>
    %41 = arith.cmpf oge, %35, %40 : vector<64x1xf32>
    %cst_31 = arith.constant 1.000000e+00 : f32
    %42 = vector.broadcast %cst_31 : f32 to vector<64x1xf32>
    %43 = arith.select %41, %42, %39 : vector<64x1xi1>, vector<64x1xf32>
    %cst_32 = arith.constant 1.000000e+00 : f32
    %44 = vector.broadcast %cst_32 : f32 to vector<64x1xf32>
    %45 = arith.addf %44, %39 : vector<64x1xf32>
    %46 = arith.divf %43, %45 : vector<64x1xf32>
    %c0_33 = arith.constant 0 : index
    %c0_34 = arith.constant 0 : index
    %c0_35 = arith.constant 0 : index
    %47 = vector.load %arg12[%c0_33, %c0_34, %c0_35] : memref<1x64x1xf32, #tpu.memory_space<vmem>>, vector<1x64x1xf32>
    %48 = vector.shape_cast %47 : vector<1x64x1xf32> to vector<64x1xf32>
    %49 = vector.shape_cast %46 : vector<64x1xf32> to vector<1x64x1xf32>
    tpu.vector_store %arg12[%c0_33, %c0_34, %c0_35], %49 {strides = array<i32>} : memref<1x64x1xf32, #tpu.memory_space<vmem>>, vector<1x64x1xf32>,
    return
  }
  func.func @transform_0(%arg0: i32, %arg1: i32) -> (i32, i32, i32) {
    %c0_i32 = arith.constant 0 : i32
    %c0_i32_0 = arith.constant 0 : i32
    %c0_i32_1 = arith.constant 0 : i32
    return %arg0, %c0_i32, %c0_i32_0 : i32, i32, i32
  }
  func.func @transform_1(%arg0: i32, %arg1: i32) -> (i32, i32, i32) {
    %c0_i32 = arith.constant 0 : i32
    %c0_i32_0 = arith.constant 0 : i32
    %c0_i32_1 = arith.constant 0 : i32
    return %arg0, %c0_i32, %c0_i32_0 : i32, i32, i32
  }
  func.func @transform_2(%arg0: i32, %arg1: i32) -> (i32, i32, i32) {
    %c0_i32 = arith.constant 0 : i32
    %c0_i32_0 = arith.constant 0 : i32
    return %arg0, %arg1, %c0_i32 : i32, i32, i32
  }
  func.func @transform_3(%arg0: i32, %arg1: i32) -> (i32, i32) {
    %c0_i32 = arith.constant 0 : i32
    %c0_i32_0 = arith.constant 0 : i32
    %c0_i32_1 = arith.constant 0 : i32
    return %c0_i32, %c0_i32_0 : i32, i32
  }
  func.func @transform_4(%arg0: i32, %arg1: i32) -> (i32, i32) {
    %c0_i32 = arith.constant 0 : i32
    %c0_i32_0 = arith.constant 0 : i32
    %c0_i32_1 = arith.constant 0 : i32
    return %c0_i32, %c0_i32_0 : i32, i32
  }
  func.func @transform_5(%arg0: i32, %arg1: i32) -> (i32, i32) {
    %c0_i32 = arith.constant 0 : i32
    %c0_i32_0 = arith.constant 0 : i32
    %c0_i32_1 = arith.constant 0 : i32
    return %c0_i32, %c0_i32_0 : i32, i32
  }
  func.func @transform_6(%arg0: i32, %arg1: i32) -> (i32, i32) {
    %c0_i32 = arith.constant 0 : i32
    %c0_i32_0 = arith.constant 0 : i32
    %c0_i32_1 = arith.constant 0 : i32
    return %c0_i32, %c0_i32_0 : i32, i32
  }
  func.func @transform_7(%arg0: i32, %arg1: i32) -> (i32, i32) {
    %c0_i32 = arith.constant 0 : i32
    %c0_i32_0 = arith.constant 0 : i32
    %c0_i32_1 = arith.constant 0 : i32
    return %c0_i32, %c0_i32_0 : i32, i32
  }
  func.func @transform_8(%arg0: i32, %arg1: i32) -> (i32, i32) {
    %c0_i32 = arith.constant 0 : i32
    %c0_i32_0 = arith.constant 0 : i32
    %c0_i32_1 = arith.constant 0 : i32
    return %c0_i32, %c0_i32_0 : i32, i32
  }
  func.func @transform_9(%arg0: i32, %arg1: i32) -> (i32, i32) {
    %c0_i32 = arith.constant 0 : i32
    %c0_i32_0 = arith.constant 0 : i32
    %c0_i32_1 = arith.constant 0 : i32
    return %c0_i32, %c0_i32_0 : i32, i32
  }
  func.func @transform_10(%arg0: i32, %arg1: i32) -> (i32, i32, i32) {
    %c0_i32 = arith.constant 0 : i32
    %c0_i32_0 = arith.constant 0 : i32
    return %arg0, %arg1, %c0_i32 : i32, i32, i32
  }
}

</mosaic_0001>

<llo_original>
// kernel: reranker_forward.1
$region0: #{reranker_forward.1}
  #allocation0 [shape = 'u32[]', space=smem, size = 0x4, offset = 0x4, fixed_abs, tag = 'smem constant byte address 0x4 - core index']
  #allocation1 [shape = 'u32[144,128]{1,0:T(1,128)}', space=vmem, size = 0x12000, scoped, tag = 'internal scratch']
  %s0 = inlined_call_operand.vmem [shape: f32[4,1,64], index: 0, kind: input, shape index: {}]
  %s1 = inlined_call_operand.vmem [shape: f32[4,1,1], index: 1, kind: input, shape index: {}]
  %s2 = inlined_call_operand.vmem [shape: bf16[4,64,32], index: 2, kind: input, shape index: {}]
  %s3 = inlined_call_operand.vmem [shape: bf16[32,64], index: 3, kind: input, shape index: {}]
  %s4 = inlined_call_operand.vmem [shape: bf16[64,96], index: 4, kind: input, shape index: {}]
  %s5 = inlined_call_operand.vmem [shape: f32[1,96], index: 5, kind: input, shape index: {}]
  %s6 = inlined_call_operand.vmem [shape: bf16[96,128], index: 6, kind: input, shape index: {}]
  %s7 = inlined_call_operand.vmem [shape: f32[1,128], index: 7, kind: input, shape index: {}]
  %s8 = inlined_call_operand.vmem [shape: bf16[128,1], index: 8, kind: input, shape index: {}]
  %s9 = inlined_call_operand.vmem [shape: bf16[32,1], index: 9, kind: input, shape index: {}]
  %s10 = inlined_call_operand.vmem [shape: f32[4,64,1], index: 10, kind: output, shape index: {}]
  %s11 = sld [smem:[#allocation0]]
  $region73: #{reranker_forward.1} parent=0
    _
  %s13 = ssub.s32 1, %s11
  %s14 = scalar_select 0, %s13, %s11
  loop: start=0, step=1, limit=6
  $region2: #{reranker_forward.1} parent=0 // loop_pre_header
    _
  $region3: #{reranker_forward.1} parent=0 // loop_header
    %s16 = sphi 0, %s20
    %p17 = scmp.ge.s32.totalorder %s16, 6
    %s23 = sphi 0, %s35
    %s24 = sphi 0, %s31
    %s25 = sphi 0, %s23
    %s26 = sphi 0, %s24
    %s27 = sphi 0, %s25
    %s28 = sphi 0, %s26
    %s38 = sphi 0, %s40
    %s41 = sphi 0, %s38
    %s42 = sphi 0, %s41
    %s58 = sphi 0, %s42
    %s64 = sphi 0, %s66
    %s67 = sphi 0, %s64
    %s68 = sphi 0, %s67
    %s84 = sphi 0, %s68
    %s92 = sphi 0, %s94
    %s95 = sphi 0, %s92
    %s96 = sphi 0, %s95
    %s112 = sphi 0, %s96
    %s116 = sphi 0, %s116
    %s118 = sphi 0, %s116
    %s119 = sphi 0, %s118
    %s133 = sphi 0, %s119
    %s137 = sphi 0, %s137
    %s139 = sphi 0, %s137
    %s140 = sphi 0, %s139
    %s154 = sphi 0, %s140
    %s158 = sphi 0, %s158
    %s160 = sphi 0, %s158
    %s161 = sphi 0, %s160
    %s175 = sphi 0, %s161
    %s179 = sphi 0, %s179
    %s181 = sphi 0, %s179
    %s182 = sphi 0, %s181
    %s196 = sphi 0, %s182
    %s200 = sphi 0, %s200
    %s202 = sphi 0, %s200
    %s203 = sphi 0, %s202
    %s217 = sphi 0, %s203
    %s221 = sphi 0, %s221
    %s223 = sphi 0, %s221
    %s224 = sphi 0, %s223
    %s238 = sphi 0, %s224
    %s242 = sphi 0, %s242
    %s244 = sphi 0, %s242
    %s245 = sphi 0, %s244
    %s259 = sphi 0, %s245
    %s267 = sphi 0, %s269
    %s270 = sphi 0, %s267
    %s271 = sphi 0, %s270
    %s287 = sphi 0, %s271
  $region4: #{reranker_forward.1} parent=0 // loop_header_branch
    %19 = sbr.rel (%p17) target = $region8
  $region5: #{reranker_forward.1} parent=0 // loop_body
    %s21 = ssub.s32 %s16, 1
    %s22 = ssub.s32 %s16, 2
    %s29 = sadd.s32 1, %s24
    %p30 = scmp.ge.s32.totalorder %s29, 1
    %s31 = scalar_select %p30, 0, %s29
    %s32 = sadd.s32 1, %s23
    %s33 = scalar_select %p30, %s32, %s23
    %p34 = scmp.ge.s32.totalorder %s33, 4
    %s35 = scalar_select %p34, 0, %s33
    %s36 = ssub.s32 %s23, %s35
    %p37 = scmp.eq.s32.totalorder %s36, 0
    %s39 = sadd.s32 %s38, 1
    %s40 = scalar_select %p37, %s38, %s39
    %p43 = pneg %p37
    %p44 = scmp.eq.s32.totalorder %s16, 3
    %p45 = por %p43, %p44
    %p46 = scmp.ne.s32.totalorder %s38, %s41
    %p47 = scmp.eq.s32.totalorder %s16, 0
    %p48 = por %p46, %p47
    %p49 = scmp.ne.s32.totalorder %s38, %s41
    %p50 = scmp.eq.s32.totalorder %s21, 3
    %p51 = por %p49, %p50
    %p52 = scmp.ne.s32.totalorder %s41, %s42
    %p53 = scmp.eq.s32.totalorder %s21, 0
    %p54 = por %p52, %p53
    %p55 = scmp.ne.s32.totalorder %s41, %s42
    %p56 = scmp.eq.s32.totalorder %s22, 3
    %p57 = por %p55, %p56
    %p59 = scmp.ne.s32.totalorder %s42, %s58
    %p60 = scmp.eq.s32.totalorder %s22, 0
    %p61 = por %p59, %p60
    %s62 = ssub.s32 %s23, %s35
    %p63 = scmp.eq.s32.totalorder %s62, 0
    %s65 = sadd.s32 %s64, 1
    %s66 = scalar_select %p63, %s64, %s65
    %p69 = pneg %p63
    %p70 = scmp.eq.s32.totalorder %s16, 3
    %p71 = por %p69, %p70
    %p72 = scmp.ne.s32.totalorder %s64, %s67
    %p73 = scmp.eq.s32.totalorder %s16, 0
    %p74 = por %p72, %p73
    %p75 = scmp.ne.s32.totalorder %s64, %s67
    %p76 = scmp.eq.s32.totalorder %s21, 3
    %p77 = por %p75, %p76
    %p78 = scmp.ne.s32.totalorder %s67, %s68
    %p79 = scmp.eq.s32.totalorder %s21, 0
    %p80 = por %p78, %p79
    %p81 = scmp.ne.s32.totalorder %s67, %s68
    %p82 = scmp.eq.s32.totalorder %s22, 3
    %p83 = por %p81, %p82
    %p85 = scmp.ne.s32.totalorder %s68, %s84
    %p86 = scmp.eq.s32.totalorder %s22, 0
    %p87 = por %p85, %p86
    %s88 = ssub.s32 %s23, %s35
    %s89 = ssub.s32 %s24, %s31
    %s90 = sor.u32 %s88, %s89
    %p91 = scmp.eq.s32.totalorder %s90, 0
    %s93 = sadd.s32 %s92, 1
    %s94 = scalar_select %p91, %s92, %s93
    %p97 = pneg %p91
    %p98 = scmp.eq.s32.totalorder %s16, 3
    %p99 = por %p97, %p98
    %p100 = scmp.ne.s32.totalorder %s92, %s95
    %p101 = scmp.eq.s32.totalorder %s16, 0
    %p102 = por %p100, %p101
    %p103 = scmp.ne.s32.totalorder %s92, %s95
    %p104 = scmp.eq.s32.totalorder %s21, 3
    %p105 = por %p103, %p104
    %p106 = scmp.ne.s32.totalorder %s95, %s96
    %p107 = scmp.eq.s32.totalorder %s21, 0
    %p108 = por %p106, %p107
    %p109 = scmp.ne.s32.totalorder %s95, %s96
    %p110 = scmp.eq.s32.totalorder %s22, 3
    %p111 = por %p109, %p110
    %p113 = scmp.ne.s32.totalorder %s96, %s112
    %p114 = scmp.eq.s32.totalorder %s22, 0
    %p115 = por %p113, %p114
    %s117 = sadd.s32 %s116, 1
    %p120 = scmp.eq.s32.totalorder %s16, 3
    %p121 = scmp.ne.s32.totalorder %s116, %s118
    %p122 = scmp.eq.s32.totalorder %s16, 0
    %p123 = por %p121, %p122
    %p124 = scmp.ne.s32.totalorder %s116, %s118
    %p125 = scmp.eq.s32.totalorder %s21, 3
    %p126 = por %p124, %p125
    %p127 = scmp.ne.s32.totalorder %s118, %s119
    %p128 = scmp.eq.s32.totalorder %s21, 0
    %p129 = por %p127, %p128
    %p130 = scmp.ne.s32.totalorder %s118, %s119
    %p131 = scmp.eq.s32.totalorder %s22, 3
    %p132 = por %p130, %p131
    %p134 = scmp.ne.s32.totalorder %s119, %s133
    %p135 = scmp.eq.s32.totalorder %s22, 0
    %p136 = por %p134, %p135
    %s138 = sadd.s32 %s137, 1
    %p141 = scmp.eq.s32.totalorder %s16, 3
    %p142 = scmp.ne.s32.totalorder %s137, %s139
    %p143 = scmp.eq.s32.totalorder %s16, 0
    %p144 = por %p142, %p143
    %p145 = scmp.ne.s32.totalorder %s137, %s139
    %p146 = scmp.eq.s32.totalorder %s21, 3
    %p147 = por %p145, %p146
    %p148 = scmp.ne.s32.totalorder %s139, %s140
    %p149 = scmp.eq.s32.totalorder %s21, 0
    %p150 = por %p148, %p149
    %p151 = scmp.ne.s32.totalorder %s139, %s140
    %p152 = scmp.eq.s32.totalorder %s22, 3
    %p153 = por %p151, %p152
    %p155 = scmp.ne.s32.totalorder %s140, %s154
    %p156 = scmp.eq.s32.totalorder %s22, 0
    %p157 = por %p155, %p156
    %s159 = sadd.s32 %s158, 1
    %p162 = scmp.eq.s32.totalorder %s16, 3
    %p163 = scmp.ne.s32.totalorder %s158, %s160
    %p164 = scmp.eq.s32.totalorder %s16, 0
    %p165 = por %p163, %p164
    %p166 = scmp.ne.s32.totalorder %s158, %s160
    %p167 = scmp.eq.s32.totalorder %s21, 3
    %p168 = por %p166, %p167
    %p169 = scmp.ne.s32.totalorder %s160, %s161
    %p170 = scmp.eq.s32.totalorder %s21, 0
    %p171 = por %p169, %p170
    %p172 = scmp.ne.s32.totalorder %s160, %s161
    %p173 = scmp.eq.s32.totalorder %s22, 3
    %p174 = por %p172, %p173
    %p176 = scmp.ne.s32.totalorder %s161, %s175
    %p177 = scmp.eq.s32.totalorder %s22, 0
    %p178 = por %p176, %p177
    %s180 = sadd.s32 %s179, 1
    %p183 = scmp.eq.s32.totalorder %s16, 3
    %p184 = scmp.ne.s32.totalorder %s179, %s181
    %p185 = scmp.eq.s32.totalorder %s16, 0
    %p186 = por %p184, %p185
    %p187 = scmp.ne.s32.totalorder %s179, %s181
    %p188 = scmp.eq.s32.totalorder %s21, 3
    %p189 = por %p187, %p188
    %p190 = scmp.ne.s32.totalorder %s181, %s182
    %p191 = scmp.eq.s32.totalorder %s21, 0
    %p192 = por %p190, %p191
    %p193 = scmp.ne.s32.totalorder %s181, %s182
    %p194 = scmp.eq.s32.totalorder %s22, 3
    %p195 = por %p193, %p194
    %p197 = scmp.ne.s32.totalorder %s182, %s196
    %p198 = scmp.eq.s32.totalorder %s22, 0
    %p199 = por %p197, %p198
    %s201 = sadd.s32 %s200, 1
    %p204 = scmp.eq.s32.totalorder %s16, 3
    %p205 = scmp.ne.s32.totalorder %s200, %s202
    %p206 = scmp.eq.s32.totalorder %s16, 0
    %p207 = por %p205, %p206
    %p208 = scmp.ne.s32.totalorder %s200, %s202
    %p209 = scmp.eq.s32.totalorder %s21, 3
    %p210 = por %p208, %p209
    %p211 = scmp.ne.s32.totalorder %s202, %s203
    %p212 = scmp.eq.s32.totalorder %s21, 0
    %p213 = por %p211, %p212
    %p214 = scmp.ne.s32.totalorder %s202, %s203
    %p215 = scmp.eq.s32.totalorder %s22, 3
    %p216 = por %p214, %p215
    %p218 = scmp.ne.s32.totalorder %s203, %s217
    %p219 = scmp.eq.s32.totalorder %s22, 0
    %p220 = por %p218, %p219
    %s222 = sadd.s32 %s221, 1
    %p225 = scmp.eq.s32.totalorder %s16, 3
    %p226 = scmp.ne.s32.totalorder %s221, %s223
    %p227 = scmp.eq.s32.totalorder %s16, 0
    %p228 = por %p226, %p227
    %p229 = scmp.ne.s32.totalorder %s221, %s223
    %p230 = scmp.eq.s32.totalorder %s21, 3
    %p231 = por %p229, %p230
    %p232 = scmp.ne.s32.totalorder %s223, %s224
    %p233 = scmp.eq.s32.totalorder %s21, 0
    %p234 = por %p232, %p233
    %p235 = scmp.ne.s32.totalorder %s223, %s224
    %p236 = scmp.eq.s32.totalorder %s22, 3
    %p237 = por %p235, %p236
    %p239 = scmp.ne.s32.totalorder %s224, %s238
    %p240 = scmp.eq.s32.totalorder %s22, 0
    %p241 = por %p239, %p240
    %s243 = sadd.s32 %s242, 1
    %p246 = scmp.eq.s32.totalorder %s16, 3
    %p247 = scmp.ne.s32.totalorder %s242, %s244
    %p248 = scmp.eq.s32.totalorder %s16, 0
    %p249 = por %p247, %p248
    %p250 = scmp.ne.s32.totalorder %s242, %s244
    %p251 = scmp.eq.s32.totalorder %s21, 3
    %p252 = por %p250, %p251
    %p253 = scmp.ne.s32.totalorder %s244, %s245
    %p254 = scmp.eq.s32.totalorder %s21, 0
    %p255 = por %p253, %p254
    %p256 = scmp.ne.s32.totalorder %s244, %s245
    %p257 = scmp.eq.s32.totalorder %s22, 3
    %p258 = por %p256, %p257
    %p260 = scmp.ne.s32.totalorder %s245, %s259
    %p261 = scmp.eq.s32.totalorder %s22, 0
    %p262 = por %p260, %p261
    %s263 = ssub.s32 %s23, %s35
    %s264 = ssub.s32 %s24, %s31
    %s265 = sor.u32 %s263, %s264
    %p266 = scmp.eq.s32.totalorder %s265, 0
    %s268 = sadd.s32 %s267, 1
    %s269 = scalar_select %p266, %s267, %s268
    %p272 = pneg %p266
    %p273 = scmp.eq.s32.totalorder %s16, 3
    %p274 = por %p272, %p273
    %p275 = scmp.ne.s32.totalorder %s267, %s270
    %p276 = scmp.eq.s32.totalorder %s16, 0
    %p277 = por %p275, %p276
    %p278 = scmp.ne.s32.totalorder %s267, %s270
    %p279 = scmp.eq.s32.totalorder %s21, 3
    %p280 = por %p278, %p279
    %p281 = scmp.ne.s32.totalorder %s270, %s271
    %p282 = scmp.eq.s32.totalorder %s21, 0
    %p283 = por %p281, %p282
    %p284 = scmp.ne.s32.totalorder %s270, %s271
    %p285 = scmp.eq.s32.totalorder %s22, 3
    %p286 = por %p284, %p285
    %p288 = scmp.ne.s32.totalorder %s271, %s287
    %p289 = scmp.eq.s32.totalorder %s22, 0
    %p290 = por %p288, %p289
    %p291 = scmp.le.s32.totalorder 1, %s16
    %p292 = scmp.lt.s32.totalorder %s16, 5
    %p293 = pnand %p291, %p292
    %p294 = pneg %p293
    // Predicated region
    $region9: #{reranker_forward.1} parent=5 // pred_check
      _
    $region10: #{reranker_forward.1} parent=5 // pred_check_branch
      %296 = sbr.rel (%p293) target = $region12
    $region11: #{reranker_forward.1} parent=5 // pred_region
      %s297 = ssub.s32 %s16, 1
      // Predicated region
      $region13: #{reranker_forward.1} parent=11 // pred_check
        %p298 = pneg %p129
      $region14: #{reranker_forward.1} parent=11 // pred_check_branch
        %300 = sbr.rel (%p298) target = $region16
      $region15: #{reranker_forward.1} parent=11 // pred_region
        _
      $region16: #{reranker_forward.1} parent=11 // pred_fallthru
        _
      // Predicated region
      $region17: #{reranker_forward.1} parent=11 // pred_check
        %p301 = pneg %p150
      $region18: #{reranker_forward.1} parent=11 // pred_check_branch
        %303 = sbr.rel (%p301) target = $region20
      $region19: #{reranker_forward.1} parent=11 // pred_region
        _
      $region20: #{reranker_forward.1} parent=11 // pred_fallthru
        _
      // Predicated region
      $region21: #{reranker_forward.1} parent=11 // pred_check
        %p304 = pneg %p171
      $region22: #{reranker_forward.1} parent=11 // pred_check_branch
        %306 = sbr.rel (%p304) target = $region24
      $region23: #{reranker_forward.1} parent=11 // pred_region
        _
      $region24: #{reranker_forward.1} parent=11 // pred_fallthru
        _
      // Predicated region
      $region25: #{reranker_forward.1} parent=11 // pred_check
        %p307 = pneg %p192
      $region26: #{reranker_forward.1} parent=11 // pred_check_branch
        %309 = sbr.rel (%p307) target = $region28
      $region27: #{reranker_forward.1} parent=11 // pred_region
        _
      $region28: #{reranker_forward.1} parent=11 // pred_fallthru
        _
      // Predicated region
      $region29: #{reranker_forward.1} parent=11 // pred_check
        %p310 = pneg %p213
      $region30: #{reranker_forward.1} parent=11 // pred_check_branch
        %312 = sbr.rel (%p310) target = $region32
      $region31: #{reranker_forward.1} parent=11 // pred_region
        _
      $region32: #{reranker_forward.1} parent=11 // pred_fallthru
        _
      // Predicated region
      $region33: #{reranker_forward.1} parent=11 // pred_check
        %p313 = pneg %p234
      $region34: #{reranker_forward.1} parent=11 // pred_check_branch
        %315 = sbr.rel (%p313) target = $region36
      $region35: #{reranker_forward.1} parent=11 // pred_region
        _
      $region36: #{reranker_forward.1} parent=11 // pred_fallthru
        _
      // Predicated region
      $region37: #{reranker_forward.1} parent=11 // pred_check
        %p316 = pneg %p255
      $region38: #{reranker_forward.1} parent=11 // pred_check_branch
        %318 = sbr.rel (%p316) target = $region40
      $region39: #{reranker_forward.1} parent=11 // pred_region
        _
      $region40: #{reranker_forward.1} parent=11 // pred_fallthru
        _
    $region12: #{reranker_forward.1} parent=5 // pred_fallthru
      _
    %p319 = scmp.lt.s32.totalorder %s16, 4
    // Predicated region
    $region41: #{reranker_forward.1} parent=5 // pred_check
      %p320 = pneg %p319
    $region42: #{reranker_forward.1} parent=5 // pred_check_branch
      %322 = sbr.rel (%p320) target = $region44
    $region43: #{reranker_forward.1} parent=5 // pred_region
      // Predicated region
      $region45: #{reranker_forward.1} parent=43 // pred_check
        %p323 = pneg %p48
      $region46: #{reranker_forward.1} parent=43 // pred_check_branch
        %325 = sbr.rel (%p323) target = $region48
      $region47: #{reranker_forward.1} parent=43 // pred_region
        %p326 = scmp.lt.s32.totalorder %s23, 3
        %s327 = scalar_select %p326, %s23, 3
        %s328 = scalar_lea.vmem %s0, %s327
      $region48: #{reranker_forward.1} parent=43 // pred_fallthru
        _
      // Predicated region
      $region49: #{reranker_forward.1} parent=43 // pred_check
        %p329 = pneg %p74
      $region50: #{reranker_forward.1} parent=43 // pred_check_branch
        %331 = sbr.rel (%p329) target = $region52
      $region51: #{reranker_forward.1} parent=43 // pred_region
        %p332 = scmp.lt.s32.totalorder %s23, 3
        %s333 = scalar_select %p332, %s23, 3
        %s334 = scalar_lea.vmem %s1, %s333
      $region52: #{reranker_forward.1} parent=43 // pred_fallthru
        _
      // Predicated region
      $region53: #{reranker_forward.1} parent=43 // pred_check
        %p335 = pneg %p102
      $region54: #{reranker_forward.1} parent=43 // pred_check_branch
        %337 = sbr.rel (%p335) target = $region56
      $region55: #{reranker_forward.1} parent=43 // pred_region
        %s338 = smul.u32 8, %s24
        %p339 = scmp.lt.s32.totalorder %s23, 3
        %s340 = scalar_select %p339, %s23, 3
        %p341 = scmp.lt.s32.totalorder %s338, 7
        %s342 = scalar_select %p341, %s338, 7
        %s343 = smul.addr %s340, 8
        %s344 = sadd.s32 %s342, %s343
        %s345 = smul.addr %s344, 4
        %s346 = scalar_lea.vmem %s2, %s345
        %s347 = smul.u32 8, %s24
      $region56: #{reranker_forward.1} parent=43 // pred_fallthru
        _
    $region44: #{reranker_forward.1} parent=5 // pred_fallthru
      _
    %p348 = scmp.le.s32.totalorder 1, %s16
    %p349 = scmp.lt.s32.totalorder %s16, 5
    %p350 = pnand %p348, %p349
    %p351 = pneg %p350
    // Predicated region
    $region57: #{reranker_forward.1} parent=5 // pred_check
      _
    $region58: #{reranker_forward.1} parent=5 // pred_check_branch
      %353 = sbr.rel (%p350) target = $region60
    $region59: #{reranker_forward.1} parent=5 // pred_region
      %s354 = ssub.s32 %s16, 1
      %p355 = scmp.lt.s32.totalorder %s25, 3
      %s356 = scalar_select %p355, %s25, 3
      %s357 = scalar_lea.vmem %s0, %s356
      %p358 = pneg %p54
      %p359 = pneg %p51
      %p360 = scmp.lt.s32.totalorder %s25, 3
      %s361 = scalar_select %p360, %s25, 3
      %s362 = scalar_lea.vmem %s1, %s361
      %p363 = pneg %p80
      %p364 = pneg %p77
      %s365 = smul.u32 8, %s26
      %p366 = scmp.lt.s32.totalorder %s25, 3
      %s367 = scalar_select %p366, %s25, 3
      %p368 = scmp.lt.s32.totalorder %s365, 7
      %s369 = scalar_select %p368, %s365, 7
      %s370 = smul.addr %s367, 8
      %s371 = sadd.s32 %s369, %s370
      %s372 = smul.addr %s371, 4
      %s373 = scalar_lea.vmem %s2, %s372
      %p374 = pneg %p108
      %p375 = pneg %p105
      %p376 = pneg %p129
      %p377 = pneg %p126
      %p378 = pneg %p150
      %p379 = pneg %p147
      %p380 = pneg %p171
      %p381 = pneg %p168
      %p382 = pneg %p192
      %p383 = pneg %p189
      %p384 = pneg %p213
      %p385 = pneg %p210
      %p386 = pneg %p234
      %p387 = pneg %p231
      %p388 = pneg %p255
      %p389 = pneg %p252
      %p390 = pneg %p283
      %p391 = pneg %p280
      %s392 = smul.u32 8, %s26
      %p393 = scmp.lt.s32.totalorder %s25, 3
      %s394 = scalar_select %p393, %s25, 3
      %p395 = scmp.lt.s32.totalorder %s392, 7
      %s396 = scalar_select %p395, %s392, 7
      %s397 = smul.addr %s394, 8
      %s398 = sadd.s32 %s396, %s397
      %s399 = smul.addr %s398, 8
      %s400 = scalar_lea.vmem %s10, %s399
      %p401 = scmp.lt.s32.totalorder %s25, 3
      %s402 = scalar_select %p401, %s25, 3
      %s403 = scalar_lea.vmem %s0, %s402
      %p404 = scmp.lt.s32.totalorder %s25, 3
      %s405 = scalar_select %p404, %s25, 3
      %s406 = scalar_lea.vmem %s1, %s405
      %s407 = smul.u32 8, %s26
      %p408 = scmp.lt.s32.totalorder %s25, 3
      %s409 = scalar_select %p408, %s25, 3
      %p410 = scmp.lt.s32.totalorder %s407, 7
      %s411 = scalar_select %p410, %s407, 7
      %s412 = smul.addr %s409, 8
      %s413 = sadd.s32 %s411, %s412
      %s414 = smul.addr %s413, 4
      %s415 = scalar_lea.vmem %s2, %s414
      %s416 = smul.u32 8, %s26
      %s417 = smul.u32 8, %s26
      %p418 = scmp.lt.s32.totalorder %s25, 3
      %s419 = scalar_select %p418, %s25, 3
      %p420 = scmp.lt.s32.totalorder %s417, 7
      %s421 = scalar_select %p420, %s417, 7
      %s422 = smul.addr %s419, 8
      %s423 = sadd.s32 %s421, %s422
      %s424 = smul.addr %s423, 8
      %s425 = scalar_lea.vmem %s10, %s424
      %s426 = smul.u32 8, %s26
      %v428 = vld [vmem:[%s415] sm:$0xf]
      %v429 = vld [vmem:[%s415 + $0x4] sm:$0xf]
      %v430 = vld [vmem:[%s415 + $0x8] sm:$0xf]
      %v431 = vld [vmem:[%s415 + $0xc] sm:$0xf]
      %v432 = vld [vmem:[%s415 + $0x10] sm:$0xf]
      %v433 = vld [vmem:[%s415 + $0x14] sm:$0xf]
      %v434 = vld [vmem:[%s415 + $0x18] sm:$0xf]
      %v435 = vld [vmem:[%s415 + $0x1c] sm:$0xf]
      %v436 = vld [vmem:[%s403] sm:$0x1]
      %v437 = vld [vmem:[%s406] sm:$0x1]
      %v438 = vld [vmem:[%s3] sm:$0xf]
      %v439 = vld [vmem:[%s3 + $0x4] sm:$0xf]
      %v440 = vld [vmem:[%s3 + $0x8] sm:$0xf]
      %v441 = vld [vmem:[%s3 + $0xc] sm:$0xf]
      %v443 = vlaneseq
      %v444 = vshrl.u32 %v443, 7
      %v445 = vsub.s32 0, %v444
      %v446 = vrot.slane %v436, %v445
      %v456 = vunpack.c.l.b16 %v428
      %v457 = vunpack.c.l.b16 %v429
      %v458 = vunpack.c.l.b16 %v430
      %v459 = vunpack.c.l.b16 %v431
      %v460 = vunpack.c.l.b16 %v432
      %v461 = vunpack.c.l.b16 %v433
      %v462 = vunpack.c.l.b16 %v434
      %v463 = vunpack.c.l.b16 %v435
      %v464 = vpack.c.b16 %v457, %v456
      %v465 = vpack.c.b16 %v459, %v458
      %v466 = vpack.c.b16 %v461, %v460
      %v467 = vpack.c.b16 %v463, %v462
      %v472 = vunpack.c.l.b16 %v438
      %v473 = vunpack.c.l.b16 %v439
      %v474 = vunpack.c.l.b16 %v440
      %v475 = vunpack.c.l.b16 %v441
      %v476 = vpack.c.b16 %v473, %v472
      %v477 = vpack.c.b16 %v475, %v474
      %vm480 = vcmask 261120
      %v482 = vsel %vm480, %v464, 0
      %v485 = vsel %vm480, %v465, 0
      %v488 = vsel %vm480, %v466, 0
      %v491 = vsel %vm480, %v467, 0
      %493 = vmatprep.subr.bf16.mxu0 0
      %494 = vmatpush1.bf16.msra.mxu0 %v476
      %495 = vmatprep.subr.bf16.mxu0 0
      %496 = vmatpush1.bf16.msra.mxu0 %v477
      %497 = vmatprep.subr.bf16.mxu0 0
      %498 = vmatpush1.bf16.msra.mxu0 0
      %499 = vmatprep.subr.bf16.mxu0 0
      %500 = vmatpush1.bf16.msra.mxu0 0
      %501 = vmatprep.subr.bf16.mxu0 0
      %502 = vmatpush1.bf16.msra.mxu0 0
      %503 = vmatprep.subr.bf16.mxu0 0
      %504 = vmatpush1.bf16.msra.mxu0 0
      %505 = vmatprep.subr.bf16.mxu0 0
      %506 = vmatpush1.bf16.msra.mxu0 0
      %507 = vmatprep.subr.bf16.mxu0 0
      %508 = vmatpush1.bf16.msra.mxu0 0
      %509 = vmatprep.subr.bf16.mxu0 0
      %510 = vmatpush1.bf16.msra.mxu0 0
      %511 = vmatprep.subr.bf16.mxu0 0
      %512 = vmatpush1.bf16.msra.mxu0 0
      %513 = vmatprep.subr.bf16.mxu0 0
      %514 = vmatpush1.bf16.msra.mxu0 0
      %515 = vmatprep.subr.bf16.mxu0 0
      %516 = vmatpush1.bf16.msra.mxu0 0
      %517 = vmatprep.subr.bf16.mxu0 0
      %518 = vmatpush1.bf16.msra.mxu0 0
      %519 = vmatprep.subr.bf16.mxu0 0
      %520 = vmatpush1.bf16.msra.mxu0 0
      %521 = vmatprep.subr.bf16.mxu0 0
      %522 = vmatpush1.bf16.msra.mxu0 0
      %523 = vmatprep.subr.bf16.mxu0 0
      %524 = vmatpush1.bf16.msra.mxu0 0
      %525 = vmatprep.mubr.bf16.mxu0 0
      %526 = vmatmul.mubr.bf16.gmra.mrb[0].mxu0 %v482
      %v527 = vpop.f32.mrb[0].mxu0
      %v528 = vadd.f32 %v446, %v527
      %v529 = vpop.f32.mrb[0].mxu0
      %v530 = vpop.f32.mrb[0].mxu0
      %v531 = vadd.f32 %v446, %v530
      %v532 = vpop.f32.mrb[0].mxu0
      %533 = vmatprep.mubr.bf16.mxu0 0
      %534 = vmatmul.mubr.bf16.gmra.mrb[0].mxu0 %v485
      %v535 = vpop.f32.mrb[0].mxu0
      %v536 = vadd.f32 %v446, %v535
      %v537 = vpop.f32.mrb[0].mxu0
      %v538 = vpop.f32.mrb[0].mxu0
      %v539 = vadd.f32 %v446, %v538
      %v540 = vpop.f32.mrb[0].mxu0
      %541 = vmatprep.mubr.bf16.mxu0 0
      %542 = vmatmul.mubr.bf16.gmra.mrb[0].mxu0 %v488
      %v543 = vpop.f32.mrb[0].mxu0
      %v544 = vadd.f32 %v446, %v543
      %v545 = vpop.f32.mrb[0].mxu0
      %v546 = vpop.f32.mrb[0].mxu0
      %v547 = vadd.f32 %v446, %v546
      %v548 = vpop.f32.mrb[0].mxu0
      %549 = vmatprep.mubr.bf16.mxu0 0
      %550 = vmatmul.mubr.bf16.gmra.mrb[0].mxu0 %v491
      %v551 = vpop.f32.mrb[0].mxu0
      %v552 = vadd.f32 %v446, %v551
      %v553 = vpop.f32.mrb[0].mxu0
      %v554 = vpop.f32.mrb[0].mxu0
      %v555 = vadd.f32 %v446, %v554
      %v556 = vpop.f32.mrb[0].mxu0
      %557 = vdwg.mxu0
      %v558 = vmax.f32 %v528, 0.0
      %v559 = vmax.f32 %v531, 0.0
      %v560 = vmax.f32 %v536, 0.0
      %v561 = vmax.f32 %v539, 0.0
      %v562 = vmax.f32 %v544, 0.0
      %v563 = vmax.f32 %v547, 0.0
      %v564 = vmax.f32 %v552, 0.0
      %v565 = vmax.f32 %v555, 0.0
      %v566 = vpack.c.bf16 %v559, %v558
      %v567 = vpack.c.bf16 %v561, %v560
      %v568 = vpack.c.bf16 %v563, %v562
      %v569 = vpack.c.bf16 %v565, %v564
      %v570 = vld [vmem:[%s4] sm:$0xf]
      %v571 = vld [vmem:[%s4 + $0x4] sm:$0xf]
      %v572 = vld [vmem:[%s4 + $0x8] sm:$0xf]
      %v573 = vld [vmem:[%s4 + $0xc] sm:$0xf]
      %v574 = vld [vmem:[%s4 + $0x10] sm:$0xf]
      %v575 = vld [vmem:[%s4 + $0x14] sm:$0xf]
      %v576 = vld [vmem:[%s4 + $0x18] sm:$0xf]
      %v577 = vld [vmem:[%s4 + $0x1c] sm:$0xf]
      %v578 = vld [vmem:[%s5] sm:$0x1]
      %v580 = vlaneseq
      %v581 = vshrl.u32 %v580, 7
      %v582 = vsub.s32 0, %v581
      %v583 = vrot.slane %v578, %v582
      %v593 = vunpack.c.l.b16 %v570
      %v594 = vunpack.c.l.b16 %v571
      %v595 = vunpack.c.l.b16 %v572
      %v596 = vunpack.c.l.b16 %v573
      %v597 = vunpack.c.l.b16 %v574
      %v598 = vunpack.c.l.b16 %v575
      %v599 = vunpack.c.l.b16 %v576
      %v600 = vunpack.c.l.b16 %v577
      %v601 = vpack.c.b16 %v594, %v593
      %v602 = vpack.c.b16 %v596, %v595
      %v603 = vpack.c.b16 %v598, %v597
      %v604 = vpack.c.b16 %v600, %v599
      %vm609 = vcmask 523264
      %v611 = vsel %vm609, %v566, 0
      %v614 = vsel %vm609, %v567, 0
      %v617 = vsel %vm609, %v568, 0
      %v620 = vsel %vm609, %v569, 0
      %622 = vmatprep.subr.bf16.mxu0 0
      %623 = vmatpush1.bf16.msra.mxu0 %v601
      %624 = vmatprep.subr.bf16.mxu0 0
      %625 = vmatpush1.bf16.msra.mxu0 %v602
      %626 = vmatprep.subr.bf16.mxu0 0
      %627 = vmatpush1.bf16.msra.mxu0 %v603
      %628 = vmatprep.subr.bf16.mxu0 0
      %629 = vmatpush1.bf16.msra.mxu0 %v604
      %630 = vmatprep.subr.bf16.mxu0 0
      %631 = vmatpush1.bf16.msra.mxu0 0
      %632 = vmatprep.subr.bf16.mxu0 0
      %633 = vmatpush1.bf16.msra.mxu0 0
      %634 = vmatprep.subr.bf16.mxu0 0
      %635 = vmatpush1.bf16.msra.mxu0 0
      %636 = vmatprep.subr.bf16.mxu0 0
      %637 = vmatpush1.bf16.msra.mxu0 0
      %638 = vmatprep.subr.bf16.mxu0 0
      %639 = vmatpush1.bf16.msra.mxu0 0
      %640 = vmatprep.subr.bf16.mxu0 0
      %641 = vmatpush1.bf16.msra.mxu0 0
      %642 = vmatprep.subr.bf16.mxu0 0
      %643 = vmatpush1.bf16.msra.mxu0 0
      %644 = vmatprep.subr.bf16.mxu0 0
      %645 = vmatpush1.bf16.msra.mxu0 0
      %646 = vmatprep.subr.bf16.mxu0 0
      %647 = vmatpush1.bf16.msra.mxu0 0
      %648 = vmatprep.subr.bf16.mxu0 0
      %649 = vmatpush1.bf16.msra.mxu0 0
      %650 = vmatprep.subr.bf16.mxu0 0
      %651 = vmatpush1.bf16.msra.mxu0 0
      %652 = vmatprep.subr.bf16.mxu0 0
      %653 = vmatpush1.bf16.msra.mxu0 0
      %654 = vmatprep.mubr.bf16.mxu0 0
      %655 = vmatmul.mubr.bf16.gmra.mrb[0].mxu0 %v611
      %v656 = vpop.f32.mrb[0].mxu0
      %v657 = vadd.f32 %v583, %v656
      %v658 = vpop.f32.mrb[0].mxu0
      %v659 = vpop.f32.mrb[0].mxu0
      %v660 = vadd.f32 %v583, %v659
      %v661 = vpop.f32.mrb[0].mxu0
      %662 = vmatprep.mubr.bf16.mxu0 0
      %663 = vmatmul.mubr.bf16.gmra.mrb[0].mxu0 %v614
      %v664 = vpop.f32.mrb[0].mxu0
      %v665 = vadd.f32 %v583, %v664
      %v666 = vpop.f32.mrb[0].mxu0
      %v667 = vpop.f32.mrb[0].mxu0
      %v668 = vadd.f32 %v583, %v667
      %v669 = vpop.f32.mrb[0].mxu0
      %670 = vmatprep.mubr.bf16.mxu0 0
      %671 = vmatmul.mubr.bf16.gmra.mrb[0].mxu0 %v617
      %v672 = vpop.f32.mrb[0].mxu0
      %v673 = vadd.f32 %v583, %v672
      %v674 = vpop.f32.mrb[0].mxu0
      %v675 = vpop.f32.mrb[0].mxu0
      %v676 = vadd.f32 %v583, %v675
      %v677 = vpop.f32.mrb[0].mxu0
      %678 = vmatprep.mubr.bf16.mxu0 0
      %679 = vmatmul.mubr.bf16.gmra.mrb[0].mxu0 %v620
      %v680 = vpop.f32.mrb[0].mxu0
      %v681 = vadd.f32 %v583, %v680
      %v682 = vpop.f32.mrb[0].mxu0
      %v683 = vpop.f32.mrb[0].mxu0
      %v684 = vadd.f32 %v583, %v683
      %v685 = vpop.f32.mrb[0].mxu0
      %686 = vdwg.mxu0
      %v687 = vmax.f32 %v657, 0.0
      %v688 = vmax.f32 %v660, 0.0
      %v689 = vmax.f32 %v665, 0.0
      %v690 = vmax.f32 %v668, 0.0
      %v691 = vmax.f32 %v673, 0.0
      %v692 = vmax.f32 %v676, 0.0
      %v693 = vmax.f32 %v681, 0.0
      %v694 = vmax.f32 %v684, 0.0
      %v695 = vpack.c.bf16 %v688, %v687
      %v696 = vpack.c.bf16 %v690, %v689
      %v697 = vpack.c.bf16 %v692, %v691
      %v698 = vpack.c.bf16 %v694, %v693
      %v699 = vld [vmem:[%s6] sm:$0xf]
      %v700 = vld [vmem:[%s6 + $0x4] sm:$0xf]
      %v701 = vld [vmem:[%s6 + $0x8] sm:$0xf]
      %v702 = vld [vmem:[%s6 + $0xc] sm:$0xf]
      %v703 = vld [vmem:[%s6 + $0x10] sm:$0xf]
      %v704 = vld [vmem:[%s6 + $0x14] sm:$0xf]
      %v705 = vld [vmem:[%s6 + $0x18] sm:$0xf]
      %v706 = vld [vmem:[%s6 + $0x1c] sm:$0xf]
      %v707 = vld [vmem:[%s6 + $0x20] sm:$0xf]
      %v708 = vld [vmem:[%s6 + $0x24] sm:$0xf]
      %v709 = vld [vmem:[%s6 + $0x28] sm:$0xf]
      %v710 = vld [vmem:[%s6 + $0x2c] sm:$0xf]
      %v711 = vld [vmem:[%s7] sm:$0x1]
      %v713 = vlaneseq
      %v714 = vshrl.u32 %v713, 7
      %v715 = vsub.s32 0, %v714
      %v716 = vrot.slane %v711, %v715
      %v730 = vunpack.c.l.b16 %v699
      %v731 = vunpack.c.l.b16 %v700
      %v732 = vunpack.c.l.b16 %v701
      %v733 = vunpack.c.l.b16 %v702
      %v734 = vunpack.c.l.b16 %v703
      %v735 = vunpack.c.l.b16 %v704
      %v736 = vunpack.c.l.b16 %v705
      %v737 = vunpack.c.l.b16 %v706
      %v738 = vunpack.c.l.b16 %v707
      %v739 = vunpack.c.l.b16 %v708
      %v740 = vunpack.c.l.b16 %v709
      %v741 = vunpack.c.l.b16 %v710
      %v742 = vpack.c.b16 %v731, %v730
      %v743 = vpack.c.b16 %v733, %v732
      %v744 = vpack.c.b16 %v735, %v734
      %v745 = vpack.c.b16 %v737, %v736
      %v746 = vpack.c.b16 %v739, %v738
      %v747 = vpack.c.b16 %v741, %v740
      %vm754 = vcmask 785408
      %v756 = vsel %vm754, %v695, 0
      %v759 = vsel %vm754, %v696, 0
      %v762 = vsel %vm754, %v697, 0
      %v765 = vsel %vm754, %v698, 0
      %767 = vmatprep.subr.bf16.mxu0 0
      %768 = vmatpush1.bf16.msra.mxu0 %v742
      %769 = vmatprep.subr.bf16.mxu0 0
      %770 = vmatpush1.bf16.msra.mxu0 %v743
      %771 = vmatprep.subr.bf16.mxu0 0
      %772 = vmatpush1.bf16.msra.mxu0 %v744
      %773 = vmatprep.subr.bf16.mxu0 0
      %774 = vmatpush1.bf16.msra.mxu0 %v745
      %775 = vmatprep.subr.bf16.mxu0 0
      %776 = vmatpush1.bf16.msra.mxu0 %v746
      %777 = vmatprep.subr.bf16.mxu0 0
      %778 = vmatpush1.bf16.msra.mxu0 %v747
      %779 = vmatprep.subr.bf16.mxu0 0
      %780 = vmatpush1.bf16.msra.mxu0 0
      %781 = vmatprep.subr.bf16.mxu0 0
      %782 = vmatpush1.bf16.msra.mxu0 0
      %783 = vmatprep.subr.bf16.mxu0 0
      %784 = vmatpush1.bf16.msra.mxu0 0
      %785 = vmatprep.subr.bf16.mxu0 0
      %786 = vmatpush1.bf16.msra.mxu0 0
      %787 = vmatprep.subr.bf16.mxu0 0
      %788 = vmatpush1.bf16.msra.mxu0 0
      %789 = vmatprep.subr.bf16.mxu0 0
      %790 = vmatpush1.bf16.msra.mxu0 0
      %791 = vmatprep.subr.bf16.mxu0 0
      %792 = vmatpush1.bf16.msra.mxu0 0
      %793 = vmatprep.subr.bf16.mxu0 0
      %794 = vmatpush1.bf16.msra.mxu0 0
      %795 = vmatprep.subr.bf16.mxu0 0
      %796 = vmatpush1.bf16.msra.mxu0 0
      %797 = vmatprep.subr.bf16.mxu0 0
      %798 = vmatpush1.bf16.msra.mxu0 0
      %799 = vmatprep.mubr.bf16.mxu0 0
      %800 = vmatmul.mubr.bf16.gmra.mrb[0].mxu0 %v756
      %v801 = vpop.f32.mrb[0].mxu0
      %v802 = vadd.f32 %v716, %v801
      %v803 = vpop.f32.mrb[0].mxu0
      %v804 = vpop.f32.mrb[0].mxu0
      %v805 = vadd.f32 %v716, %v804
      %v806 = vpop.f32.mrb[0].mxu0
      %807 = vmatprep.mubr.bf16.mxu0 0
      %808 = vmatmul.mubr.bf16.gmra.mrb[0].mxu0 %v759
      %v809 = vpop.f32.mrb[0].mxu0
      %v810 = vadd.f32 %v716, %v809
      %v811 = vpop.f32.mrb[0].mxu0
      %v812 = vpop.f32.mrb[0].mxu0
      %v813 = vadd.f32 %v716, %v812
      %v814 = vpop.f32.mrb[0].mxu0
      %815 = vmatprep.mubr.bf16.mxu0 0
      %816 = vmatmul.mubr.bf16.gmra.mrb[0].mxu0 %v762
      %v817 = vpop.f32.mrb[0].mxu0
      %v818 = vadd.f32 %v716, %v817
      %v819 = vpop.f32.mrb[0].mxu0
      %v820 = vpop.f32.mrb[0].mxu0
      %v821 = vadd.f32 %v716, %v820
      %v822 = vpop.f32.mrb[0].mxu0
      %823 = vmatprep.mubr.bf16.mxu0 0
      %824 = vmatmul.mubr.bf16.gmra.mrb[0].mxu0 %v765
      %v825 = vpop.f32.mrb[0].mxu0
      %v826 = vadd.f32 %v716, %v825
      %v827 = vpop.f32.mrb[0].mxu0
      %v828 = vpop.f32.mrb[0].mxu0
      %v829 = vadd.f32 %v716, %v828
      %v830 = vpop.f32.mrb[0].mxu0
      %831 = vdwg.mxu0
      %v832 = vmax.f32 %v802, 0.0
      %v833 = vmax.f32 %v805, 0.0
      %v834 = vmax.f32 %v810, 0.0
      %v835 = vmax.f32 %v813, 0.0
      %v836 = vmax.f32 %v818, 0.0
      %v837 = vmax.f32 %v821, 0.0
      %v838 = vmax.f32 %v826, 0.0
      %v839 = vmax.f32 %v829, 0.0
      %v840 = vpack.c.bf16 %v833, %v832
      %v841 = vpack.c.bf16 %v835, %v834
      %v842 = vpack.c.bf16 %v837, %v836
      %v843 = vpack.c.bf16 %v839, %v838
      %v844 = vld [vmem:[%s8] sm:$0xf]
      %v845 = vld [vmem:[%s8 + $0x4] sm:$0xf]
      %v846 = vld [vmem:[%s8 + $0x8] sm:$0xf]
      %v847 = vld [vmem:[%s8 + $0xc] sm:$0xf]
      %v848 = vld [vmem:[%s8 + $0x10] sm:$0xf]
      %v849 = vld [vmem:[%s8 + $0x14] sm:$0xf]
      %v850 = vld [vmem:[%s8 + $0x18] sm:$0xf]
      %v851 = vld [vmem:[%s8 + $0x1c] sm:$0xf]
      %v852 = vld [vmem:[%s8 + $0x20] sm:$0xf]
      %v853 = vld [vmem:[%s8 + $0x24] sm:$0xf]
      %v854 = vld [vmem:[%s8 + $0x28] sm:$0xf]
      %v855 = vld [vmem:[%s8 + $0x2c] sm:$0xf]
      %v856 = vld [vmem:[%s8 + $0x30] sm:$0xf]
      %v857 = vld [vmem:[%s8 + $0x34] sm:$0xf]
      %v858 = vld [vmem:[%s8 + $0x38] sm:$0xf]
      %v859 = vld [vmem:[%s8 + $0x3c] sm:$0xf]
      %v860 = vld [vmem:[%s9] sm:$0xf]
      %v861 = vld [vmem:[%s9 + $0x4] sm:$0xf]
      %v862 = vld [vmem:[%s9 + $0x8] sm:$0xf]
      %v863 = vld [vmem:[%s9 + $0xc] sm:$0xf]
      %v868 = vunpack.c.l.b16 %v860
      %v869 = vunpack.c.l.b16 %v861
      %v870 = vunpack.c.l.b16 %v862
      %v871 = vunpack.c.l.b16 %v863
      %v872 = vpack.c.b16 %v869, %v868
      %v873 = vpack.c.b16 %v871, %v870
      %876 = vmatprep.subr.bf16.mxu0 0
      %877 = vmatpush1.bf16.msra.mxu0 %v872
      %878 = vmatprep.subr.bf16.mxu0 0
      %879 = vmatpush1.bf16.msra.mxu0 %v873
      %880 = vmatprep.subr.bf16.mxu0 0
      %881 = vmatpush1.bf16.msra.mxu0 0
      %882 = vmatprep.subr.bf16.mxu0 0
      %883 = vmatpush1.bf16.msra.mxu0 0
      %884 = vmatprep.subr.bf16.mxu0 0
      %885 = vmatpush1.bf16.msra.mxu0 0
      %886 = vmatprep.subr.bf16.mxu0 0
      %887 = vmatpush1.bf16.msra.mxu0 0
      %888 = vmatprep.subr.bf16.mxu0 0
      %889 = vmatpush1.bf16.msra.mxu0 0
      %890 = vmatprep.subr.bf16.mxu0 0
      %891 = vmatpush1.bf16.msra.mxu0 0
      %892 = vmatprep.subr.bf16.mxu0 0
      %893 = vmatpush1.bf16.msra.mxu0 0
      %894 = vmatprep.subr.bf16.mxu0 0
      %895 = vmatpush1.bf16.msra.mxu0 0
      %896 = vmatprep.subr.bf16.mxu0 0
      %897 = vmatpush1.bf16.msra.mxu0 0
      %898 = vmatprep.subr.bf16.mxu0 0
      %899 = vmatpush1.bf16.msra.mxu0 0
      %900 = vmatprep.subr.bf16.mxu0 0
      %901 = vmatpush1.bf16.msra.mxu0 0
      %902 = vmatprep.subr.bf16.mxu0 0
      %903 = vmatpush1.bf16.msra.mxu0 0
      %904 = vmatprep.subr.bf16.mxu0 0
      %905 = vmatpush1.bf16.msra.mxu0 0
      %906 = vmatprep.subr.bf16.mxu0 0
      %907 = vmatpush1.bf16.msra.mxu0 0
      %908 = vmatprep.mubr.bf16.mxu0 0
      %909 = vmatmul.mubr.bf16.gmra.mrb[0].mxu0 %v482
      %v910 = vpop.f32.mrb[0].mxu0
      %v911 = vadd.f32 0.0, %v910
      %v912 = vpop.f32.mrb[0].mxu0
      %v913 = vpop.f32.mrb[0].mxu0
      %v914 = vadd.f32 0.0, %v913
      %v915 = vpop.f32.mrb[0].mxu0
      %916 = vmatprep.mubr.bf16.mxu0 0
      %917 = vmatmul.mubr.bf16.gmra.mrb[0].mxu0 %v485
      %v918 = vpop.f32.mrb[0].mxu0
      %v919 = vadd.f32 0.0, %v918
      %v920 = vpop.f32.mrb[0].mxu0
      %v921 = vpop.f32.mrb[0].mxu0
      %v922 = vadd.f32 0.0, %v921
      %v923 = vpop.f32.mrb[0].mxu0
      %924 = vmatprep.mubr.bf16.mxu0 0
      %925 = vmatmul.mubr.bf16.gmra.mrb[0].mxu0 %v488
      %v926 = vpop.f32.mrb[0].mxu0
      %v927 = vadd.f32 0.0, %v926
      %v928 = vpop.f32.mrb[0].mxu0
      %v929 = vpop.f32.mrb[0].mxu0
      %v930 = vadd.f32 0.0, %v929
      %v931 = vpop.f32.mrb[0].mxu0
      %932 = vmatprep.mubr.bf16.mxu0 0
      %933 = vmatmul.mubr.bf16.gmra.mrb[0].mxu0 %v491
      %v934 = vpop.f32.mrb[0].mxu0
      %v935 = vadd.f32 0.0, %v934
      %v936 = vpop.f32.mrb[0].mxu0
      %v937 = vpop.f32.mrb[0].mxu0
      %v938 = vadd.f32 0.0, %v937
      %v939 = vpop.f32.mrb[0].mxu0
      %940 = vdwg.mxu0
      %v957 = vunpack.c.l.b16 %v844
      %v958 = vunpack.c.l.b16 %v845
      %v959 = vunpack.c.l.b16 %v846
      %v960 = vunpack.c.l.b16 %v847
      %v961 = vunpack.c.l.b16 %v848
      %v962 = vunpack.c.l.b16 %v849
      %v963 = vunpack.c.l.b16 %v850
      %v964 = vunpack.c.l.b16 %v851
      %v965 = vunpack.c.l.b16 %v852
      %v966 = vunpack.c.l.b16 %v853
      %v967 = vunpack.c.l.b16 %v854
      %v968 = vunpack.c.l.b16 %v855
      %v969 = vunpack.c.l.b16 %v856
      %v970 = vunpack.c.l.b16 %v857
      %v971 = vunpack.c.l.b16 %v858
      %v972 = vunpack.c.l.b16 %v859
      %v973 = vpack.c.b16 %v958, %v957
      %v974 = vpack.c.b16 %v960, %v959
      %v975 = vpack.c.b16 %v962, %v961
      %v976 = vpack.c.b16 %v964, %v963
      %v977 = vpack.c.b16 %v966, %v965
      %v978 = vpack.c.b16 %v968, %v967
      %v979 = vpack.c.b16 %v970, %v969
      %v980 = vpack.c.b16 %v972, %v971
      %989 = vmatprep.subr.bf16.mxu0 0
      %990 = vmatpush1.bf16.msra.mxu0 %v973
      %991 = vmatprep.subr.bf16.mxu0 0
      %992 = vmatpush1.bf16.msra.mxu0 %v974
      %993 = vmatprep.subr.bf16.mxu0 0
      %994 = vmatpush1.bf16.msra.mxu0 %v975
      %995 = vmatprep.subr.bf16.mxu0 0
      %996 = vmatpush1.bf16.msra.mxu0 %v976
      %997 = vmatprep.subr.bf16.mxu0 0
      %998 = vmatpush1.bf16.msra.mxu0 %v977
      %999 = vmatprep.subr.bf16.mxu0 0
      %1000 = vmatpush1.bf16.msra.mxu0 %v978
      %1001 = vmatprep.subr.bf16.mxu0 0
      %1002 = vmatpush1.bf16.msra.mxu0 %v979
      %1003 = vmatprep.subr.bf16.mxu0 0
      %1004 = vmatpush1.bf16.msra.mxu0 %v980
      %1005 = vmatprep.subr.bf16.mxu0 0
      %1006 = vmatpush1.bf16.msra.mxu0 0
      %1007 = vmatprep.subr.bf16.mxu0 0
      %1008 = vmatpush1.bf16.msra.mxu0 0
      %1009 = vmatprep.subr.bf16.mxu0 0
      %1010 = vmatpush1.bf16.msra.mxu0 0
      %1011 = vmatprep.subr.bf16.mxu0 0
      %1012 = vmatpush1.bf16.msra.mxu0 0
      %1013 = vmatprep.subr.bf16.mxu0 0
      %1014 = vmatpush1.bf16.msra.mxu0 0
      %1015 = vmatprep.subr.bf16.mxu0 0
      %1016 = vmatpush1.bf16.msra.mxu0 0
      %1017 = vmatprep.subr.bf16.mxu0 0
      %1018 = vmatpush1.bf16.msra.mxu0 0
      %1019 = vmatprep.subr.bf16.mxu0 0
      %1020 = vmatpush1.bf16.msra.mxu0 0
      %1021 = vmatprep.mubr.bf16.mxu0 0
      %1022 = vmatmul.mubr.bf16.gmra.mrb[0].mxu0 %v840
      %v1023 = vpop.f32.mrb[0].mxu0
      %v1024 = vadd.f32 %v911, %v1023
      %v1025 = vpop.f32.mrb[0].mxu0
      %v1026 = vpop.f32.mrb[0].mxu0
      %v1027 = vadd.f32 %v914, %v1026
      %v1028 = vpop.f32.mrb[0].mxu0
      %1029 = vmatprep.mubr.bf16.mxu0 0
      %1030 = vmatmul.mubr.bf16.gmra.mrb[0].mxu0 %v841
      %v1031 = vpop.f32.mrb[0].mxu0
      %v1032 = vadd.f32 %v919, %v1031
      %v1033 = vpop.f32.mrb[0].mxu0
      %v1034 = vpop.f32.mrb[0].mxu0
      %v1035 = vadd.f32 %v922, %v1034
      %v1036 = vpop.f32.mrb[0].mxu0
      %1037 = vmatprep.mubr.bf16.mxu0 0
      %1038 = vmatmul.mubr.bf16.gmra.mrb[0].mxu0 %v842
      %v1039 = vpop.f32.mrb[0].mxu0
      %v1040 = vadd.f32 %v927, %v1039
      %v1041 = vpop.f32.mrb[0].mxu0
      %v1042 = vpop.f32.mrb[0].mxu0
      %v1043 = vadd.f32 %v930, %v1042
      %v1044 = vpop.f32.mrb[0].mxu0
      %1045 = vmatprep.mubr.bf16.mxu0 0
      %1046 = vmatmul.mubr.bf16.gmra.mrb[0].mxu0 %v843
      %v1047 = vpop.f32.mrb[0].mxu0
      %v1048 = vadd.f32 %v935, %v1047
      %v1049 = vpop.f32.mrb[0].mxu0
      %v1050 = vpop.f32.mrb[0].mxu0
      %v1051 = vadd.f32 %v938, %v1050
      %v1052 = vpop.f32.mrb[0].mxu0
      %1053 = vdwg.mxu0
      %v1055 = vlaneseq
      %v1056 = vshrl.u32 %v1055, 7
      %v1057 = vsub.s32 0, %v1056
      %v1058 = vrot.slane %v437, %v1057
      %v1060 = vadd.f32 %v1024, %v1058
      %v1061 = vadd.f32 %v1027, %v1058
      %v1062 = vadd.f32 %v1032, %v1058
      %v1063 = vadd.f32 %v1035, %v1058
      %v1064 = vadd.f32 %v1040, %v1058
      %v1065 = vadd.f32 %v1043, %v1058
      %v1066 = vadd.f32 %v1048, %v1058
      %v1067 = vadd.f32 %v1051, %v1058
      %v1068 = vand.u32 2147483647, %v1060
      %v1069 = vand.u32 2147483647, %v1061
      %v1070 = vand.u32 2147483647, %v1062
      %v1071 = vand.u32 2147483647, %v1063
      %v1072 = vand.u32 2147483647, %v1064
      %v1073 = vand.u32 2147483647, %v1065
      %v1074 = vand.u32 2147483647, %v1066
      %v1075 = vand.u32 2147483647, %v1067
      %v1076 = vsub.f32 0.0, %v1068
      %v1077 = vsub.f32 0.0, %v1069
      %v1078 = vsub.f32 0.0, %v1070
      %v1079 = vsub.f32 0.0, %v1071
      %v1080 = vsub.f32 0.0, %v1072
      %v1081 = vsub.f32 0.0, %v1073
      %v1082 = vsub.f32 0.0, %v1074
      %v1083 = vsub.f32 0.0, %v1075
      %v1084 = vmul.f32 %v1076, 1.442695
      %v1085 = vpow.pop %v1084
      %v1086 = vmul.f32 %v1077, 1.442695
      %v1087 = vpow.pop %v1086
      %v1088 = vmul.f32 %v1078, 1.442695
      %v1089 = vpow.pop %v1088
      %v1090 = vmul.f32 %v1079, 1.442695
      %v1091 = vpow.pop %v1090
      %v1092 = vmul.f32 %v1080, 1.442695
      %v1093 = vpow.pop %v1092
      %v1094 = vmul.f32 %v1081, 1.442695
      %v1095 = vpow.pop %v1094
      %v1096 = vmul.f32 %v1082, 1.442695
      %v1097 = vpow.pop %v1096
      %v1098 = vmul.f32 %v1083, 1.442695
      %v1099 = vpow.pop %v1098
      %vm1100 = vcmp.ge.f32.partialorder %v1060, 0.0
      %vm1101 = vcmp.ge.f32.partialorder %v1061, 0.0
      %vm1102 = vcmp.ge.f32.partialorder %v1062, 0.0
      %vm1103 = vcmp.ge.f32.partialorder %v1063, 0.0
      %vm1104 = vcmp.ge.f32.partialorder %v1064, 0.0
      %vm1105 = vcmp.ge.f32.partialorder %v1065, 0.0
      %vm1106 = vcmp.ge.f32.partialorder %v1066, 0.0
      %vm1107 = vcmp.ge.f32.partialorder %v1067, 0.0
      %v1108 = vsel %vm1100, 1.0, %v1085
      %v1109 = vsel %vm1101, 1.0, %v1087
      %v1110 = vsel %vm1102, 1.0, %v1089
      %v1111 = vsel %vm1103, 1.0, %v1091
      %v1112 = vsel %vm1104, 1.0, %v1093
      %v1113 = vsel %vm1105, 1.0, %v1095
      %v1114 = vsel %vm1106, 1.0, %v1097
      %v1115 = vsel %vm1107, 1.0, %v1099
      %v1116 = vadd.f32 %v1085, 1.0
      %v1117 = vadd.f32 %v1087, 1.0
      %v1118 = vadd.f32 %v1089, 1.0
      %v1119 = vadd.f32 %v1091, 1.0
      %v1120 = vadd.f32 %v1093, 1.0
      %v1121 = vadd.f32 %v1095, 1.0
      %v1122 = vadd.f32 %v1097, 1.0
      %v1123 = vadd.f32 %v1099, 1.0
      %v1124 = vrcp.pop %v1116
      %v1125 = vmul.f32 %v1108, %v1124
      %v1126 = vrcp.pop %v1117
      %v1127 = vmul.f32 %v1109, %v1126
      %v1128 = vrcp.pop %v1118
      %v1129 = vmul.f32 %v1110, %v1128
      %v1130 = vrcp.pop %v1119
      %v1131 = vmul.f32 %v1111, %v1130
      %v1132 = vrcp.pop %v1120
      %v1133 = vmul.f32 %v1112, %v1132
      %v1134 = vrcp.pop %v1121
      %v1135 = vmul.f32 %v1113, %v1134
      %v1136 = vrcp.pop %v1122
      %v1137 = vmul.f32 %v1114, %v1136
      %v1138 = vrcp.pop %v1123
      %v1139 = vmul.f32 %v1115, %v1138
      %vm1140 = vcmask 7168
      %1141 = vst.msk [vmem:[%s425] sm:$0xff] %vm1140, %v1125
      %1142 = vst.msk [vmem:[%s425 + $0x8] sm:$0xff] %vm1140, %v1127
      %1143 = vst.msk [vmem:[%s425 + $0x10] sm:$0xff] %vm1140, %v1129
      %1144 = vst.msk [vmem:[%s425 + $0x18] sm:$0xff] %vm1140, %v1131
      %1145 = vst.msk [vmem:[%s425 + $0x20] sm:$0xff] %vm1140, %v1133
      %1146 = vst.msk [vmem:[%s425 + $0x28] sm:$0xff] %vm1140, %v1135
      %1147 = vst.msk [vmem:[%s425 + $0x30] sm:$0xff] %vm1140, %v1137
      %1148 = vst.msk [vmem:[%s425 + $0x38] sm:$0xff] %vm1140, %v1139
      %s1149 = smul.u32 8, %s26
      %p1150 = scmp.lt.s32.totalorder %s25, 3
      %s1151 = scalar_select %p1150, %s25, 3
      %p1152 = scmp.lt.s32.totalorder %s1149, 7
      %s1153 = scalar_select %p1152, %s1149, 7
      %s1154 = smul.addr %s1151, 8
      %s1155 = sadd.s32 %s1153, %s1154
      %s1156 = smul.addr %s1155, 8
      %s1157 = scalar_lea.vmem %s10, %s1156
      // Predicated region
      $region61: #{reranker_forward.1} parent=59 // pred_check
        %p1158 = pneg %p280
      $region62: #{reranker_forward.1} parent=59 // pred_check_branch
        %1160 = sbr.rel (%p1158) target = $region64
      $region63: #{reranker_forward.1} parent=59 // pred_region
        %s1161 = smul.u32 8, %s26
      $region64: #{reranker_forward.1} parent=59 // pred_fallthru
        _
    $region60: #{reranker_forward.1} parent=5 // pred_fallthru
      _
    %p1162 = scmp.le.s32.totalorder 2, %s16
    // Predicated region
    $region65: #{reranker_forward.1} parent=5 // pred_check
      %p1163 = pneg %p1162
    $region66: #{reranker_forward.1} parent=5 // pred_check_branch
      %1165 = sbr.rel (%p1163) target = $region68
    $region67: #{reranker_forward.1} parent=5 // pred_region
      %s1166 = ssub.s32 %s16, 2
      // Predicated region
      $region69: #{reranker_forward.1} parent=67 // pred_check
        %p1167 = pneg %p286
      $region70: #{reranker_forward.1} parent=67 // pred_check_branch
        %1169 = sbr.rel (%p1167) target = $region72
      $region71: #{reranker_forward.1} parent=67 // pred_region
        %s1170 = smul.u32 8, %s28
        %p1171 = scmp.lt.s32.totalorder %s27, 3
        %s1172 = scalar_select %p1171, %s27, 3
        %p1173 = scmp.lt.s32.totalorder %s1170, 7
        %s1174 = scalar_select %p1173, %s1170, 7
        %s1175 = smul.addr %s1172, 8
        %s1176 = sadd.s32 %s1174, %s1175
        %s1177 = smul.addr %s1176, 8
        %s1178 = scalar_lea.vmem %s10, %s1177
      $region72: #{reranker_forward.1} parent=67 // pred_fallthru
        _
    $region68: #{reranker_forward.1} parent=5 // pred_fallthru
      _
  $region6: #{reranker_forward.1} parent=0 // loop_footer
    %s20 = sadd.s32 1, %s16
  $region7: #{reranker_forward.1} parent=0 // loop_footer_branch
    %15 = sbr.rel target = $region3
  $region8: #{reranker_forward.1} parent=0 // loop_exit
    _

</llo_original>
